<compile_context>
chip_gen: v6e
topology: v6e:2x2x1
jax: 0.10.0
libtpu: 0.0.40
codegen_flags: <defaults>
</compile_context>

<pallas_src>
import functools

import jax
import jax.numpy as jnp
from jax.experimental import pallas as pl
from jax.experimental.pallas import tpu as pltpu

# Network sizes (QLearner defaults: 4 -> 256 -> 128 -> 64 -> 2).
IN_F = 4
H1 = 256
H2 = 128
H3 = 64
OUT = 2
# Lane-dense padded sizes.
H3P = 128     # hidden 64 padded to 128 lanes
OUTP = 128    # output 2 padded to 128 lanes
# Offsets into the packed bias vector (all multiples of 128 -> clean lane slices).
B1_OFF = 0
B2_OFF = H1                     # 256
B3_OFF = H1 + H2                # 384
B4_OFF = H1 + H2 + H3P          # 512
BIAS_TOT = H1 + H2 + H3P + OUTP  # 640
W234_ROWS = H1 + H2 + H3P       # 512


def qlearner_mlp_kernel(x_ref, w1_ref, w234_ref, bias_ref, out_ref):
    # ---- Layer 1 on the VPU (contraction dim is only 4) ----
    x = x_ref[...].astype(jnp.float32)           # (TB, 4)
    w1 = w1_ref[...].astype(jnp.float32)         # (4, 256)
    h = bias_ref[:, B1_OFF:B1_OFF + H1]          # (1, 256) broadcast over sublanes
    h = h + x[:, 0:1] * w1[0:1, :]
    h = h + x[:, 1:2] * w1[1:2, :]
    h = h + x[:, 2:3] * w1[2:3, :]
    h = h + x[:, 3:4] * w1[3:4, :]
    h = jnp.maximum(h, 0.0).astype(jnp.bfloat16)  # (TB, 256)

    # Static slices of the packed weight buffer (sublane-aligned offsets).
    w2 = w234_ref[0:H1, :]                  # (256, 128)
    w3 = w234_ref[H1:H1 + H2, :]            # (128, 128), cols >= 64 are zero
    w4 = w234_ref[H1 + H2:W234_ROWS, :]     # (128, 128), rows >= 64 / cols >= 2 are zero

    # ---- Layer 2 (MXU, bf16 inputs, f32 accumulation) ----
    h = jnp.dot(h, w2, preferred_element_type=jnp.float32)
    h = jnp.maximum(h + bias_ref[:, B2_OFF:B2_OFF + H2], 0.0).astype(jnp.bfloat16)

    # ---- Layer 3 (padded to 128 lanes; zero columns stay zero through ReLU) ----
    h = jnp.dot(h, w3, preferred_element_type=jnp.float32)
    h = jnp.maximum(h + bias_ref[:, B3_OFF:B3_OFF + H3P], 0.0).astype(jnp.bfloat16)

    # ---- Output layer (lane-dense 128-wide store; real Q-values in lanes 0:2) ----
    out_ref[...] = (jnp.dot(h, w4, preferred_element_type=jnp.float32)
                    + bias_ref[:, B4_OFF:B4_OFF + OUTP])


def _round_up(n, m):
    return ((n + m - 1) // m) * m


def prepare_params(params):
    """Pack PyTorch-equivalent params into kernel layout.

    params: list of (W, b) for the 4 layers with W of shape (in, out) and b of
    shape (out,) or (1, out), all f32 (i.e. W = W_torch.T).

    Returns (w1_bf16 (4,256), w234_bf16 (512,128), bias_f32 (1,640)).
    """
    (w1, b1), (w2, b2), (w3, b3), (w4, b4) = params
    b1, b2, b3, b4 = (jnp.reshape(b, (1, -1)) for b in (b1, b2, b3, b4))

    # Zero-pad the 64-wide hidden layer and 2-wide output to 128 lanes.
    w3p = jnp.pad(w3, ((0, 0), (0, H3P - w3.shape[1])))            # (128, 128)
    w4p = jnp.pad(w4, ((0, H3P - w4.shape[0]), (0, OUTP - w4.shape[1])))  # (128, 128)
    b3p = jnp.pad(b3, ((0, 0), (0, H3P - b3.shape[1])))
    b4p = jnp.pad(b4, ((0, 0), (0, OUTP - b4.shape[1])))

    w1_bf = w1.astype(jnp.bfloat16)                                 # (4, 256)
    w234 = jnp.concatenate([w2, w3p, w4p], axis=0).astype(jnp.bfloat16)  # (512, 128)
    bias = jnp.concatenate([b1, b2, b3p, b4p], axis=1).astype(jnp.float32)  # (1, 640)
    return w1_bf, w234, bias


@functools.partial(jax.jit, static_argnames=("tile_b",))
def qlearner_forward(x, prepared, tile_b=2048):
    """x: (B, 4) float32 observations. Returns (B, 2) float32 Q-values."""
    w1, w234, bias = prepared
    B = x.shape[0]

    tb = min(tile_b, _round_up(B, 8))       # small batches: one tile, no waste
    b_pad = _round_up(B, tb)
    x_bf = x.astype(jnp.bfloat16)
    if b_pad != B:
        x_bf = jnp.pad(x_bf, ((0, b_pad - B), (0, 0)))

    out = pl.pallas_call(
        qlearner_mlp_kernel,
        out_shape=jax.ShapeDtypeStruct((b_pad, OUTP), jnp.float32),
        grid=(b_pad // tb,),
        in_specs=[
            pl.BlockSpec((tb, IN_F), lambda i: (i, 0)),              # x tile
            pl.BlockSpec((IN_F, H1), lambda i: (0, 0)),              # W1 (resident)
            pl.BlockSpec((W234_ROWS, H2), lambda i: (0, 0)),         # W2|W3|W4 (resident)
            pl.BlockSpec((1, BIAS_TOT), lambda i: (0, 0)),           # packed biases
        ],
        out_specs=pl.BlockSpec((tb, OUTP), lambda i: (i, 0)),
        compiler_params=pltpu.CompilerParams(
            dimension_semantics=("parallel",)),
    )(x_bf, w1, w234, bias)
    return out[:B, :OUT]


def init_params(key, sizes=(IN_F, H1, H2, H3, OUT)):
    """Deterministic init mimicking torch.nn.Linear (U[-1/sqrt(fan_in), +1/sqrt(fan_in)])."""
    params = []
    for i in range(len(sizes) - 1):
        fan_in, fan_out = sizes[i], sizes[i + 1]
        key, kw, kb = jax.random.split(key, 3)
        bound = 1.0 / jnp.sqrt(jnp.float32(fan_in))
        w = jax.random.uniform(kw, (fan_in, fan_out), jnp.float32, -bound, bound)
        b = jax.random.uniform(kb, (1, fan_out), jnp.float32, -bound, bound)
        params.append((w, b))
    return params


def reference_forward(x, prepared):
    """Plain-JAX reference mirroring the kernel's bf16 quantization points."""
    w1, w234, bias = prepared
    w1 = w1.astype(jnp.float32)
    b1 = bias[:, B1_OFF:B1_OFF + H1]
    b2 = bias[:, B2_OFF:B2_OFF + H2]
    b3 = bias[:, B3_OFF:B3_OFF + H3P]
    b4 = bias[:, B4_OFF:B4_OFF + OUTP]
    w2 = w234[0:H1, :]
    w3 = w234[H1:H1 + H2, :]
    w4 = w234[H1 + H2:W234_ROWS, :]

    xq = x.astype(jnp.bfloat16).astype(jnp.float32)
    h = (b1 + xq[:, 0:1] * w1[0:1, :] + xq[:, 1:2] * w1[1:2, :]
         + xq[:, 2:3] * w1[2:3, :] + xq[:, 3:4] * w1[3:4, :])
    h = jnp.maximum(h, 0.0).astype(jnp.bfloat16)
    h = jnp.maximum(jnp.dot(h, w2, preferred_element_type=jnp.float32) + b2,
                    0.0).astype(jnp.bfloat16)
    h = jnp.maximum(jnp.dot(h, w3, preferred_element_type=jnp.float32) + b3,
                    0.0).astype(jnp.bfloat16)
    h = jnp.dot(h, w4, preferred_element_type=jnp.float32) + b4
    return h[:, :OUT]


if __name__ == "__main__":
    key = jax.random.PRNGKey(0)
    key, kx, kx2 = jax.random.split(key, 3)

    params = init_params(key)
    prepared = prepare_params(params)

    # Small CartPole-style batch: 8 observations of size 4.
    x = jax.random.normal(kx, (8, IN_F), dtype=jnp.float32)
    out = jax.block_until_ready(qlearner_forward(x, prepared))
    ref = reference_forward(x, prepared)
    assert out.shape == (8, OUT), out.shape
    assert jnp.allclose(out, ref, atol=1e-3, rtol=1e-3), "mismatch vs. JAX reference (B=8)"

    # Larger, non-multiple batch to exercise the grid + padding path.
    x2 = jax.random.normal(kx2, (3000, IN_F), dtype=jnp.float32)
    out2 = jax.block_until_ready(qlearner_forward(x2, prepared))
    ref2 = reference_forward(x2, prepared)
    assert out2.shape == (3000, OUT), out2.shape
    assert jnp.allclose(out2, ref2, atol=1e-3, rtol=1e-3), "mismatch vs. JAX reference (B=3000)"

    # TODO(synk): act()/learn() (epsilon-greedy, Adam/MSE update) are host-side
    # training-loop logic, not part of forward, and are not translated.
    print("KERNEL_OK")
</pallas_src>

<mosaic_0001>
module attributes {stable_mosaic.version = 11 : i64} {
  func.func @qlearner_mlp_kernel(%arg0: i32, %arg1: memref<8x4xbf16, #tpu.memory_space<vmem>>, %arg2: memref<4x256xbf16, #tpu.memory_space<vmem>>, %arg3: memref<512x128xbf16, #tpu.memory_space<vmem>>, %arg4: memref<1x640xf32, #tpu.memory_space<vmem>>, %arg5: memref<8x128xf32, #tpu.memory_space<vmem>>) attributes {dimension_semantics = [#tpu.dimension_semantics<parallel>], iteration_bounds = array<i64: 1>, scalar_prefetch = 0 : i64, scratch_operands = 0 : i64, tpu.core_type = #tpu.core_type<tc>, window_params = [{transform_indices = @transform_0, window_bounds = array<i64: 8, 4>}, {pipeline_mode = #tpu.pipeline_mode<synchronous>, transform_indices = @transform_1, window_bounds = array<i64: 4, 256>}, {pipeline_mode = #tpu.pipeline_mode<synchronous>, transform_indices = @transform_2, window_bounds = array<i64: 512, 128>}, {pipeline_mode = #tpu.pipeline_mode<synchronous>, transform_indices = @transform_3, window_bounds = array<i64: 1, 640>}, {transform_indices = @transform_4, window_bounds = array<i64: 8, 128>}]} {
    %c0 = arith.constant 0 : index
    %c0_0 = arith.constant 0 : index
    %0 = vector.load %arg1[%c0, %c0_0] : memref<8x4xbf16, #tpu.memory_space<vmem>>, vector<8x4xbf16>
    %1 = arith.extf %0 : vector<8x4xbf16> to vector<8x4xf32>
    %c0_1 = arith.constant 0 : index
    %c0_2 = arith.constant 0 : index
    %2 = vector.load %arg2[%c0_1, %c0_2] : memref<4x256xbf16, #tpu.memory_space<vmem>>, vector<4x256xbf16>
    %3 = arith.extf %2 : vector<4x256xbf16> to vector<4x256xf32>
    %c0_3 = arith.constant 0 : index
    %c0_4 = arith.constant 0 : index
    %4 = vector.load %arg4[%c0_3, %c0_4] : memref<1x640xf32, #tpu.memory_space<vmem>>, vector<1x256xf32>
    %5 = vector.extract_strided_slice %1 {offsets = [0, 0], sizes = [8, 1], strides = [1, 1]} : vector<8x4xf32> to vector<8x1xf32>
    %6 = vector.extract_strided_slice %3 {offsets = [0, 0], sizes = [1, 256], strides = [1, 1]} : vector<4x256xf32> to vector<1x256xf32>
    %7 = vector.broadcast %5 : vector<8x1xf32> to vector<8x256xf32>
    %8 = vector.broadcast %6 : vector<1x256xf32> to vector<8x256xf32>
    %9 = arith.mulf %7, %8 : vector<8x256xf32>
    %10 = vector.broadcast %4 : vector<1x256xf32> to vector<8x256xf32>
    %11 = arith.addf %10, %9 : vector<8x256xf32>
    %12 = vector.extract_strided_slice %1 {offsets = [0, 1], sizes = [8, 1], strides = [1, 1]} : vector<8x4xf32> to vector<8x1xf32>
    %13 = vector.extract_strided_slice %3 {offsets = [1, 0], sizes = [1, 256], strides = [1, 1]} : vector<4x256xf32> to vector<1x256xf32>
    %14 = vector.broadcast %12 : vector<8x1xf32> to vector<8x256xf32>
    %15 = vector.broadcast %13 : vector<1x256xf32> to vector<8x256xf32>
    %16 = arith.mulf %14, %15 : vector<8x256xf32>
    %17 = arith.addf %11, %16 : vector<8x256xf32>
    %18 = vector.extract_strided_slice %1 {offsets = [0, 2], sizes = [8, 1], strides = [1, 1]} : vector<8x4xf32> to vector<8x1xf32>
    %19 = vector.extract_strided_slice %3 {offsets = [2, 0], sizes = [1, 256], strides = [1, 1]} : vector<4x256xf32> to vector<1x256xf32>
    %20 = vector.broadcast %18 : vector<8x1xf32> to vector<8x256xf32>
    %21 = vector.broadcast %19 : vector<1x256xf32> to vector<8x256xf32>
    %22 = arith.mulf %20, %21 : vector<8x256xf32>
    %23 = arith.addf %17, %22 : vector<8x256xf32>
    %24 = vector.extract_strided_slice %1 {offsets = [0, 3], sizes = [8, 1], strides = [1, 1]} : vector<8x4xf32> to vector<8x1xf32>
    %25 = vector.extract_strided_slice %3 {offsets = [3, 0], sizes = [1, 256], strides = [1, 1]} : vector<4x256xf32> to vector<1x256xf32>
    %26 = vector.broadcast %24 : vector<8x1xf32> to vector<8x256xf32>
    %27 = vector.broadcast %25 : vector<1x256xf32> to vector<8x256xf32>
    %28 = arith.mulf %26, %27 : vector<8x256xf32>
    %29 = arith.addf %23, %28 : vector<8x256xf32>
    %cst = arith.constant 0.000000e+00 : f32
    %30 = vector.broadcast %cst : f32 to vector<8x256xf32>
    %31 = arith.maximumf %29, %30 : vector<8x256xf32>
    %32 = arith.truncf %31 : vector<8x256xf32> to vector<8x256xbf16>
    %c0_5 = arith.constant 0 : index
    %c0_6 = arith.constant 0 : index
    %33 = vector.load %arg3[%c0_5, %c0_6] : memref<512x128xbf16, #tpu.memory_space<vmem>>, vector<256x128xbf16>
    %c256 = arith.constant 256 : index
    %c0_7 = arith.constant 0 : index
    %34 = vector.load %arg3[%c256, %c0_7] : memref<512x128xbf16, #tpu.memory_space<vmem>>, vector<128x128xbf16>
    %c384 = arith.constant 384 : index
    %c0_8 = arith.constant 0 : index
    %35 = vector.load %arg3[%c384, %c0_8] : memref<512x128xbf16, #tpu.memory_space<vmem>>, vector<128x128xbf16>
    %cst_9 = arith.constant dense<0.000000e+00> : vector<8x128xf32>
    %36 = tpu.matmul %32, %33, %cst_9 {dimension_numbers = #tpu.dot_dimension_numbers<[1], [0], [0], [1], [0, 0, 1, 1], [], []>} : vector<8x256xbf16>, vector<256x128xbf16>, vector<8x128xf32> -> vector<8x128xf32>
    %c0_10 = arith.constant 0 : index
    %c256_11 = arith.constant 256 : index
    %37 = vector.load %arg4[%c0_10, %c256_11] : memref<1x640xf32, #tpu.memory_space<vmem>>, vector<1x128xf32>
    %38 = vector.broadcast %37 : vector<1x128xf32> to vector<8x128xf32>
    %39 = arith.addf %36, %38 : vector<8x128xf32>
    %cst_12 = arith.constant 0.000000e+00 : f32
    %40 = vector.broadcast %cst_12 : f32 to vector<8x128xf32>
    %41 = arith.maximumf %39, %40 : vector<8x128xf32>
    %42 = arith.truncf %41 : vector<8x128xf32> to vector<8x128xbf16>
    %cst_13 = arith.constant dense<0.000000e+00> : vector<8x128xf32>
    %43 = tpu.matmul %42, %34, %cst_13 {dimension_numbers = #tpu.dot_dimension_numbers<[1], [0], [0], [1], [0, 0, 1, 1], [], []>} : vector<8x128xbf16>, vector<128x128xbf16>, vector<8x128xf32> -> vector<8x128xf32>
    %c0_14 = arith.constant 0 : index
    %c384_15 = arith.constant 384 : index
    %44 = vector.load %arg4[%c0_14, %c384_15] : memref<1x640xf32, #tpu.memory_space<vmem>>, vector<1x128xf32>
    %45 = vector.broadcast %44 : vector<1x128xf32> to vector<8x128xf32>
    %46 = arith.addf %43, %45 : vector<8x128xf32>
    %cst_16 = arith.constant 0.000000e+00 : f32
    %47 = vector.broadcast %cst_16 : f32 to vector<8x128xf32>
    %48 = arith.maximumf %46, %47 : vector<8x128xf32>
    %49 = arith.truncf %48 : vector<8x128xf32> to vector<8x128xbf16>
    %cst_17 = arith.constant dense<0.000000e+00> : vector<8x128xf32>
    %50 = tpu.matmul %49, %35, %cst_17 {dimension_numbers = #tpu.dot_dimension_numbers<[1], [0], [0], [1], [0, 0, 1, 1], [], []>} : vector<8x128xbf16>, vector<128x128xbf16>, vector<8x128xf32> -> vector<8x128xf32>
    %c0_18 = arith.constant 0 : index
    %c512 = arith.constant 512 : index
    %51 = vector.load %arg4[%c0_18, %c512] : memref<1x640xf32, #tpu.memory_space<vmem>>, vector<1x128xf32>
    %52 = vector.broadcast %51 : vector<1x128xf32> to vector<8x128xf32>
    %53 = arith.addf %50, %52 : vector<8x128xf32>
    %c0_19 = arith.constant 0 : index
    %c0_20 = arith.constant 0 : index
    %54 = vector.load %arg5[%c0_19, %c0_20] : memref<8x128xf32, #tpu.memory_space<vmem>>, vector<8x128xf32>
    tpu.vector_store %arg5[%c0_19, %c0_20], %53 {strides = array<i32>} : memref<8x128xf32, #tpu.memory_space<vmem>>, vector<8x128xf32>,
    return
  }
  func.func @transform_0(%arg0: i32) -> (i32, i32) {
    %c0_i32 = arith.constant 0 : i32
    %c0_i32_0 = arith.constant 0 : i32
    return %arg0, %c0_i32 : i32, i32
  }
  func.func @transform_1(%arg0: i32) -> (i32, i32) {
    %c0_i32 = arith.constant 0 : i32
    %c0_i32_0 = arith.constant 0 : i32
    %c0_i32_1 = arith.constant 0 : i32
    return %c0_i32, %c0_i32_0 : i32, i32
  }
  func.func @transform_2(%arg0: i32) -> (i32, i32) {
    %c0_i32 = arith.constant 0 : i32
    %c0_i32_0 = arith.constant 0 : i32
    %c0_i32_1 = arith.constant 0 : i32
    return %c0_i32, %c0_i32_0 : i32, i32
  }
  func.func @transform_3(%arg0: i32) -> (i32, i32) {
    %c0_i32 = arith.constant 0 : i32
    %c0_i32_0 = arith.constant 0 : i32
    %c0_i32_1 = arith.constant 0 : i32
    return %c0_i32, %c0_i32_0 : i32, i32
  }
  func.func @transform_4(%arg0: i32) -> (i32, i32) {
    %c0_i32 = arith.constant 0 : i32
    %c0_i32_0 = arith.constant 0 : i32
    return %arg0, %c0_i32 : i32, i32
  }
}

</mosaic_0001>

<llo_original>
// kernel: qlearner_forward.1
$region0: #{qlearner_forward.1}
  #allocation0 [shape = 'u32[]', space=smem, size = 0x4, offset = 0x4, fixed_abs, tag = 'smem constant byte address 0x4 - core index']
  #allocation1 [shape = 'u32[144,128]{1,0:T(1,128)}', space=vmem, size = 0x12000, scoped, tag = 'internal scratch']
  %s0 = inlined_call_operand.vmem [shape: bf16[8,4], index: 0, kind: input, shape index: {}]
  %s1 = inlined_call_operand.vmem [shape: bf16[4,256], index: 1, kind: input, shape index: {}]
  %s2 = inlined_call_operand.hbm [shape: bf16[512,128], index: 2, kind: input, shape index: {}]
  %s3 = inlined_call_operand.vmem [shape: f32[1,640], index: 3, kind: input, shape index: {}]
  %s4 = inlined_call_operand.vmem [shape: f32[8,128], index: 4, kind: output, shape index: {}]
  %s5 = sld [smem:[#allocation0]]
  $region30: #{qlearner_forward.1} parent=0
    _
  %s7 = ssub.s32 1, %s5
  %s8 = scalar_select 0, %s7, %s5
  $region1: #{qlearner_forward.1} parent=0
    #allocation2 [shape = 'u8[131072]{0}', space=vmem, size = 0x20000, scoped, tag = 'input window, operand 2, single buffered']
    #allocation3 [shape = 's32[1]{0}', space=sflag, size = 0x4, scoped, tag = 'scoped memory for qlearner_forward.1']
    %9 = vsyncpa [#allocation3], 0
    // Predicated region
    $region2: #{qlearner_forward.1} parent=1 // pred_check
      _
    $region3: #{qlearner_forward.1} parent=1 // pred_check_branch
      %11 = sbr.rel (0) target = $region5
    $region4: #{qlearner_forward.1} parent=1 // pred_region
      _
    $region5: #{qlearner_forward.1} parent=1 // pred_fallthru
      _
    // Predicated region
    $region6: #{qlearner_forward.1} parent=1 // pred_check
      _
    $region7: #{qlearner_forward.1} parent=1 // pred_check_branch
      %13 = sbr.rel (0) target = $region9
    $region8: #{qlearner_forward.1} parent=1 // pred_region
      _
    $region9: #{qlearner_forward.1} parent=1 // pred_fallthru
      _
    // Predicated region
    $region10: #{qlearner_forward.1} parent=1 // pred_check
      _
    $region11: #{qlearner_forward.1} parent=1 // pred_check_branch
      %15 = sbr.rel (0) target = $region13
    $region12: #{qlearner_forward.1} parent=1 // pred_region
      %s17 = ssub.s32 4096, 4096
      %18 = vsyncadd [#allocation3], %s17
      %s19 = sshll.u32 [#allocation2], 4
      %s20 = int_to_ptr.vmem [resolvable:$true] %s19
      %25 = dma.hbm_to_vmem [thread:$0]  %s2, 4096, %s20, [#allocation3], 64, 64, 4
    $region13: #{qlearner_forward.1} parent=1 // pred_fallthru
      _
    // Predicated region
    $region14: #{qlearner_forward.1} parent=1 // pred_check
      _
    $region15: #{qlearner_forward.1} parent=1 // pred_check_branch
      %27 = sbr.rel (0) target = $region17
    $region16: #{qlearner_forward.1} parent=1 // pred_region
      _
    $region17: #{qlearner_forward.1} parent=1 // pred_fallthru
      _
    // Predicated region
    $region18: #{qlearner_forward.1} parent=1 // pred_check
      _
    $region19: #{qlearner_forward.1} parent=1 // pred_check_branch
      %29 = sbr.rel (0) target = $region21
    $region20: #{qlearner_forward.1} parent=1 // pred_region
      %30 = dma.done [#allocation3], 4096
    $region21: #{qlearner_forward.1} parent=1 // pred_fallthru
      _
    %v32 = vld [vmem:[%s0] sm:$0xf]
    %v33 = vunpack.c.l.bf16 %v32
    %v34 = vld [vmem:[%s1] sm:$0xf]
    %v35 = vunpack.c.l.bf16 %v34
    %v36 = vld [vmem:[%s3] sm:$0x3]
    %38 = vset.pattern.permute.xlu0 0
    %39 = vperm.xlu0 %38, %v33
    %v40 = vpop.permute.xlu0 %39
    %v43 = vlaneseq
    %v44 = vshrl.u32 %v43, 7
    %v45 = vsub.s32 0, %v44
    %v46 = vrot.slane %v35, %v45
    %v47 = vlaneseq
    %v48 = vshrl.u32 %v47, 7
    %v49 = vsub.s32 4, %v48
    %v50 = vrot.slane %v35, %v49
    %v53 = vlaneseq
    %v54 = vshrl.u32 %v53, 7
    %v55 = vsub.s32 0, %v54
    %v56 = vrot.slane %v46, %v55
    %v57 = vlaneseq
    %v58 = vshrl.u32 %v57, 7
    %v59 = vsub.s32 0, %v58
    %v60 = vrot.slane %v50, %v59
    %v61 = vmul.f32 %v40, %v56
    %v62 = vmul.f32 %v40, %v60
    %v64 = vlaneseq
    %v65 = vshrl.u32 %v64, 7
    %v66 = vsub.s32 0, %v65
    %v67 = vrot.slane %v36, %v66
    %v68 = vlaneseq
    %v69 = vshrl.u32 %v68, 7
    %v70 = vsub.s32 1, %v69
    %v71 = vrot.slane %v36, %v70
    %v74 = vadd.f32 %v67, %v61
    %v75 = vadd.f32 %v71, %v62
    %76 = vset.pattern.permute.xlu0 1
    %77 = vperm.xlu0 %76, %v33
    %v78 = vpop.permute.xlu0 %77
    %v80 = vlaneseq
    %v81 = vshrl.u32 %v80, 7
    %v82 = vsub.s32 1, %v81
    %v83 = vrot.slane %v35, %v82
    %v84 = vlaneseq
    %v85 = vshrl.u32 %v84, 7
    %v86 = vsub.s32 5, %v85
    %v87 = vrot.slane %v35, %v86
    %v90 = vlaneseq
    %v91 = vshrl.u32 %v90, 7
    %v92 = vsub.s32 1, %v91
    %v93 = vrot.slane %v83, %v92
    %v94 = vlaneseq
    %v95 = vshrl.u32 %v94, 7
    %v96 = vsub.s32 1, %v95
    %v97 = vrot.slane %v87, %v96
    %v98 = vmul.f32 %v78, %v93
    %v99 = vmul.f32 %v78, %v97
    %v100 = vadd.f32 %v74, %v98
    %v101 = vadd.f32 %v75, %v99
    %102 = vset.pattern.permute.xlu0 2
    %103 = vperm.xlu0 %102, %v33
    %v104 = vpop.permute.xlu0 %103
    %v106 = vlaneseq
    %v107 = vshrl.u32 %v106, 7
    %v108 = vsub.s32 2, %v107
    %v109 = vrot.slane %v35, %v108
    %v110 = vlaneseq
    %v111 = vshrl.u32 %v110, 7
    %v112 = vsub.s32 6, %v111
    %v113 = vrot.slane %v35, %v112
    %v116 = vlaneseq
    %v117 = vshrl.u32 %v116, 7
    %v118 = vsub.s32 2, %v117
    %v119 = vrot.slane %v109, %v118
    %v120 = vlaneseq
    %v121 = vshrl.u32 %v120, 7
    %v122 = vsub.s32 2, %v121
    %v123 = vrot.slane %v113, %v122
    %v124 = vmul.f32 %v104, %v119
    %v125 = vmul.f32 %v104, %v123
    %v126 = vadd.f32 %v100, %v124
    %v127 = vadd.f32 %v101, %v125
    %128 = vset.pattern.permute.xlu0 3
    %129 = vperm.xlu0 %128, %v33
    %v130 = vpop.permute.xlu0 %129
    %v132 = vlaneseq
    %v133 = vshrl.u32 %v132, 7
    %v134 = vsub.s32 3, %v133
    %v135 = vrot.slane %v35, %v134
    %v136 = vlaneseq
    %v137 = vshrl.u32 %v136, 7
    %v138 = vsub.s32 7, %v137
    %v139 = vrot.slane %v35, %v138
    %v142 = vlaneseq
    %v143 = vshrl.u32 %v142, 7
    %v144 = vsub.s32 3, %v143
    %v145 = vrot.slane %v135, %v144
    %v146 = vlaneseq
    %v147 = vshrl.u32 %v146, 7
    %v148 = vsub.s32 3, %v147
    %v149 = vrot.slane %v139, %v148
    %v150 = vmul.f32 %v130, %v145
    %v151 = vmul.f32 %v130, %v149
    %v152 = vadd.f32 %v126, %v150
    %v153 = vadd.f32 %v127, %v151
    %v154 = vmax.f32 %v152, 0.0
    %v155 = vmax.f32 %v153, 0.0
    %v156 = vpack.c.bf16 %v154, %v154
    %v157 = vpack.c.bf16 %v155, %v155
    %v158 = vld [vmem:[#allocation2] sm:$0xf]
    %v159 = vld [vmem:[#allocation2 + $0x4] sm:$0xf]
    %v160 = vld [vmem:[#allocation2 + $0x8] sm:$0xf]
    %v161 = vld [vmem:[#allocation2 + $0xc] sm:$0xf]
    %v162 = vld [vmem:[#allocation2 + $0x10] sm:$0xf]
    %v163 = vld [vmem:[#allocation2 + $0x14] sm:$0xf]
    %v164 = vld [vmem:[#allocation2 + $0x18] sm:$0xf]
    %v165 = vld [vmem:[#allocation2 + $0x1c] sm:$0xf]
    %v166 = vld [vmem:[#allocation2 + $0x20] sm:$0xf]
    %v167 = vld [vmem:[#allocation2 + $0x24] sm:$0xf]
    %v168 = vld [vmem:[#allocation2 + $0x28] sm:$0xf]
    %v169 = vld [vmem:[#allocation2 + $0x2c] sm:$0xf]
    %v170 = vld [vmem:[#allocation2 + $0x30] sm:$0xf]
    %v171 = vld [vmem:[#allocation2 + $0x34] sm:$0xf]
    %v172 = vld [vmem:[#allocation2 + $0x38] sm:$0xf]
    %v173 = vld [vmem:[#allocation2 + $0x3c] sm:$0xf]
    %v174 = vld [vmem:[#allocation2 + $0x40] sm:$0xf]
    %v175 = vld [vmem:[#allocation2 + $0x44] sm:$0xf]
    %v176 = vld [vmem:[#allocation2 + $0x48] sm:$0xf]
    %v177 = vld [vmem:[#allocation2 + $0x4c] sm:$0xf]
    %v178 = vld [vmem:[#allocation2 + $0x50] sm:$0xf]
    %v179 = vld [vmem:[#allocation2 + $0x54] sm:$0xf]
    %v180 = vld [vmem:[#allocation2 + $0x58] sm:$0xf]
    %v181 = vld [vmem:[#allocation2 + $0x5c] sm:$0xf]
    %v182 = vld [vmem:[#allocation2 + $0x60] sm:$0xf]
    %v183 = vld [vmem:[#allocation2 + $0x64] sm:$0xf]
    %v184 = vld [vmem:[#allocation2 + $0x68] sm:$0xf]
    %v185 = vld [vmem:[#allocation2 + $0x6c] sm:$0xf]
    %v186 = vld [vmem:[#allocation2 + $0x70] sm:$0xf]
    %v187 = vld [vmem:[#allocation2 + $0x74] sm:$0xf]
    %v188 = vld [vmem:[#allocation2 + $0x78] sm:$0xf]
    %v189 = vld [vmem:[#allocation2 + $0x7c] sm:$0xf]
    %v190 = vld [vmem:[#allocation2 + $0x80] sm:$0xf]
    %v191 = vld [vmem:[#allocation2 + $0x84] sm:$0xf]
    %v192 = vld [vmem:[#allocation2 + $0x88] sm:$0xf]
    %v193 = vld [vmem:[#allocation2 + $0x8c] sm:$0xf]
    %v194 = vld [vmem:[#allocation2 + $0x90] sm:$0xf]
    %v195 = vld [vmem:[#allocation2 + $0x94] sm:$0xf]
    %v196 = vld [vmem:[#allocation2 + $0x98] sm:$0xf]
    %v197 = vld [vmem:[#allocation2 + $0x9c] sm:$0xf]
    %v198 = vld [vmem:[#allocation2 + $0xa0] sm:$0xf]
    %v199 = vld [vmem:[#allocation2 + $0xa4] sm:$0xf]
    %v200 = vld [vmem:[#allocation2 + $0xa8] sm:$0xf]
    %v201 = vld [vmem:[#allocation2 + $0xac] sm:$0xf]
    %v202 = vld [vmem:[#allocation2 + $0xb0] sm:$0xf]
    %v203 = vld [vmem:[#allocation2 + $0xb4] sm:$0xf]
    %v204 = vld [vmem:[#allocation2 + $0xb8] sm:$0xf]
    %v205 = vld [vmem:[#allocation2 + $0xbc] sm:$0xf]
    %v206 = vld [vmem:[#allocation2 + $0xc0] sm:$0xf]
    %v207 = vld [vmem:[#allocation2 + $0xc4] sm:$0xf]
    %v208 = vld [vmem:[#allocation2 + $0xc8] sm:$0xf]
    %v209 = vld [vmem:[#allocation2 + $0xcc] sm:$0xf]
    %v210 = vld [vmem:[#allocation2 + $0xd0] sm:$0xf]
    %v211 = vld [vmem:[#allocation2 + $0xd4] sm:$0xf]
    %v212 = vld [vmem:[#allocation2 + $0xd8] sm:$0xf]
    %v213 = vld [vmem:[#allocation2 + $0xdc] sm:$0xf]
    %v214 = vld [vmem:[#allocation2 + $0xe0] sm:$0xf]
    %v215 = vld [vmem:[#allocation2 + $0xe4] sm:$0xf]
    %v216 = vld [vmem:[#allocation2 + $0xe8] sm:$0xf]
    %v217 = vld [vmem:[#allocation2 + $0xec] sm:$0xf]
    %v218 = vld [vmem:[#allocation2 + $0xf0] sm:$0xf]
    %v219 = vld [vmem:[#allocation2 + $0xf4] sm:$0xf]
    %v220 = vld [vmem:[#allocation2 + $0xf8] sm:$0xf]
    %v221 = vld [vmem:[#allocation2 + $0xfc] sm:$0xf]
    %v222 = vld [vmem:[%s3 + $0x2] sm:$0x1]
    %v224 = vlaneseq
    %v225 = vshrl.u32 %v224, 7
    %v226 = vsub.s32 0, %v225
    %v227 = vrot.slane %v222, %v226
    %v261 = vunpack.c.l.b16 %v158
    %v262 = vunpack.c.l.b16 %v159
    %v263 = vunpack.c.l.b16 %v160
    %v264 = vunpack.c.l.b16 %v161
    %v265 = vunpack.c.l.b16 %v162
    %v266 = vunpack.c.l.b16 %v163
    %v267 = vunpack.c.l.b16 %v164
    %v268 = vunpack.c.l.b16 %v165
    %v269 = vunpack.c.l.b16 %v166
    %v270 = vunpack.c.l.b16 %v167
    %v271 = vunpack.c.l.b16 %v168
    %v272 = vunpack.c.l.b16 %v169
    %v273 = vunpack.c.l.b16 %v170
    %v274 = vunpack.c.l.b16 %v171
    %v275 = vunpack.c.l.b16 %v172
    %v276 = vunpack.c.l.b16 %v173
    %v277 = vunpack.c.l.b16 %v174
    %v278 = vunpack.c.l.b16 %v175
    %v279 = vunpack.c.l.b16 %v176
    %v280 = vunpack.c.l.b16 %v177
    %v281 = vunpack.c.l.b16 %v178
    %v282 = vunpack.c.l.b16 %v179
    %v283 = vunpack.c.l.b16 %v180
    %v284 = vunpack.c.l.b16 %v181
    %v285 = vunpack.c.l.b16 %v182
    %v286 = vunpack.c.l.b16 %v183
    %v287 = vunpack.c.l.b16 %v184
    %v288 = vunpack.c.l.b16 %v185
    %v289 = vunpack.c.l.b16 %v186
    %v290 = vunpack.c.l.b16 %v187
    %v291 = vunpack.c.l.b16 %v188
    %v292 = vunpack.c.l.b16 %v189
    %v293 = vpack.c.b16 %v262, %v261
    %v294 = vpack.c.b16 %v264, %v263
    %v295 = vpack.c.b16 %v266, %v265
    %v296 = vpack.c.b16 %v268, %v267
    %v297 = vpack.c.b16 %v270, %v269
    %v298 = vpack.c.b16 %v272, %v271
    %v299 = vpack.c.b16 %v274, %v273
    %v300 = vpack.c.b16 %v276, %v275
    %v301 = vpack.c.b16 %v278, %v277
    %v302 = vpack.c.b16 %v280, %v279
    %v303 = vpack.c.b16 %v282, %v281
    %v304 = vpack.c.b16 %v284, %v283
    %v305 = vpack.c.b16 %v286, %v285
    %v306 = vpack.c.b16 %v288, %v287
    %v307 = vpack.c.b16 %v290, %v289
    %v308 = vpack.c.b16 %v292, %v291
    %325 = vmatprep.subr.bf16.mxu0 0
    %326 = vmatpush1.bf16.msra.mxu0 %v300
    %327 = vmatprep.subr.bf16.mxu0 0
    %328 = vmatpush1.bf16.msra.mxu0 %v299
    %329 = vmatprep.subr.bf16.mxu0 0
    %330 = vmatpush1.bf16.msra.mxu0 %v298
    %331 = vmatprep.subr.bf16.mxu0 0
    %332 = vmatpush1.bf16.msra.mxu0 %v297
    %333 = vmatprep.subr.bf16.mxu0 0
    %334 = vmatpush1.bf16.msra.mxu0 %v296
    %335 = vmatprep.subr.bf16.mxu0 0
    %336 = vmatpush1.bf16.msra.mxu0 %v295
    %337 = vmatprep.subr.bf16.mxu0 0
    %338 = vmatpush1.bf16.msra.mxu0 %v294
    %339 = vmatprep.subr.bf16.mxu0 0
    %340 = vmatpush1.bf16.msra.mxu0 %v293
    %341 = vmatprep.subr.bf16.mxu0 0
    %342 = vmatpush2.bf16.msra.mxu0 %v308
    %343 = vmatprep.subr.bf16.mxu0 0
    %344 = vmatpush2.bf16.msra.mxu0 %v307
    %345 = vmatprep.subr.bf16.mxu0 0
    %346 = vmatpush2.bf16.msra.mxu0 %v306
    %347 = vmatprep.subr.bf16.mxu0 0
    %348 = vmatpush2.bf16.msra.mxu0 %v305
    %349 = vmatprep.subr.bf16.mxu0 0
    %350 = vmatpush2.bf16.msra.mxu0 %v304
    %351 = vmatprep.subr.bf16.mxu0 0
    %352 = vmatpush2.bf16.msra.mxu0 %v303
    %353 = vmatprep.subr.bf16.mxu0 0
    %354 = vmatpush2.bf16.msra.mxu0 %v302
    %355 = vmatprep.subr.bf16.mxu0 0
    %356 = vmatpush2.bf16.msra.mxu0 %v301
    %357 = vmatprep.mubr.bf16.mxu0 %v157
    %358 = vmatmul.mubr.bf16.gmra.mxu0 %v156
    %v359 = vpop.f32.mrf.mxu0
    %v360 = vadd.f32 %v227, %v359
    %v361 = vpop.f32.mrf.mxu0
    %v362 = vpop.f32.mrf.mxu0
    %v363 = vpop.f32.mrf.mxu0
    %364 = vdwg.mxu0
    %v365 = vmax.f32 %v360, 0.0
    %v366 = vpack.c.bf16 %v365, %v365
    %v367 = vld [vmem:[%s3 + $0x3] sm:$0x1]
    %v369 = vlaneseq
    %v370 = vshrl.u32 %v369, 7
    %v371 = vsub.s32 0, %v370
    %v372 = vrot.slane %v367, %v371
    %v390 = vunpack.c.l.b16 %v190
    %v391 = vunpack.c.l.b16 %v191
    %v392 = vunpack.c.l.b16 %v192
    %v393 = vunpack.c.l.b16 %v193
    %v394 = vunpack.c.l.b16 %v194
    %v395 = vunpack.c.l.b16 %v195
    %v396 = vunpack.c.l.b16 %v196
    %v397 = vunpack.c.l.b16 %v197
    %v398 = vunpack.c.l.b16 %v198
    %v399 = vunpack.c.l.b16 %v199
    %v400 = vunpack.c.l.b16 %v200
    %v401 = vunpack.c.l.b16 %v201
    %v402 = vunpack.c.l.b16 %v202
    %v403 = vunpack.c.l.b16 %v203
    %v404 = vunpack.c.l.b16 %v204
    %v405 = vunpack.c.l.b16 %v205
    %v406 = vpack.c.b16 %v391, %v390
    %v407 = vpack.c.b16 %v393, %v392
    %v408 = vpack.c.b16 %v395, %v394
    %v409 = vpack.c.b16 %v397, %v396
    %v410 = vpack.c.b16 %v399, %v398
    %v411 = vpack.c.b16 %v401, %v400
    %v412 = vpack.c.b16 %v403, %v402
    %v413 = vpack.c.b16 %v405, %v404
    %422 = vmatprep.subr.bf16.mxu0 0
    %423 = vmatpush1.bf16.msra.mxu0 %v413
    %424 = vmatprep.subr.bf16.mxu0 0
    %425 = vmatpush1.bf16.msra.mxu0 %v412
    %426 = vmatprep.subr.bf16.mxu0 0
    %427 = vmatpush1.bf16.msra.mxu0 %v411
    %428 = vmatprep.subr.bf16.mxu0 0
    %429 = vmatpush1.bf16.msra.mxu0 %v410
    %430 = vmatprep.subr.bf16.mxu0 0
    %431 = vmatpush1.bf16.msra.mxu0 %v409
    %432 = vmatprep.subr.bf16.mxu0 0
    %433 = vmatpush1.bf16.msra.mxu0 %v408
    %434 = vmatprep.subr.bf16.mxu0 0
    %435 = vmatpush1.bf16.msra.mxu0 %v407
    %436 = vmatprep.subr.bf16.mxu0 0
    %437 = vmatpush1.bf16.msra.mxu0 %v406
    %438 = vmatprep.subr.bf16.mxu0 0
    %439 = vmatpush2.bf16.msra.mxu0 0
    %440 = vmatprep.subr.bf16.mxu0 0
    %441 = vmatpush2.bf16.msra.mxu0 0
    %442 = vmatprep.subr.bf16.mxu0 0
    %443 = vmatpush2.bf16.msra.mxu0 0
    %444 = vmatprep.subr.bf16.mxu0 0
    %445 = vmatpush2.bf16.msra.mxu0 0
    %446 = vmatprep.subr.bf16.mxu0 0
    %447 = vmatpush2.bf16.msra.mxu0 0
    %448 = vmatprep.subr.bf16.mxu0 0
    %449 = vmatpush2.bf16.msra.mxu0 0
    %450 = vmatprep.subr.bf16.mxu0 0
    %451 = vmatpush2.bf16.msra.mxu0 0
    %452 = vmatprep.subr.bf16.mxu0 0
    %453 = vmatpush2.bf16.msra.mxu0 0
    %454 = vmatprep.mubr.bf16.mxu0 0
    %455 = vmatmul.mubr.bf16.gmra.mxu0 %v366
    %v456 = vpop.f32.mrf.mxu0
    %v457 = vadd.f32 %v372, %v456
    %v458 = vpop.f32.mrf.mxu0
    %v459 = vpop.f32.mrf.mxu0
    %v460 = vpop.f32.mrf.mxu0
    %461 = vdwg.mxu0
    %v462 = vmax.f32 %v457, 0.0
    %v463 = vpack.c.bf16 %v462, %v462
    %v464 = vld [vmem:[%s3 + $0x4] sm:$0x1]
    %v466 = vlaneseq
    %v467 = vshrl.u32 %v466, 7
    %v468 = vsub.s32 0, %v467
    %v469 = vrot.slane %v464, %v468
    %v487 = vunpack.c.l.b16 %v206
    %v488 = vunpack.c.l.b16 %v207
    %v489 = vunpack.c.l.b16 %v208
    %v490 = vunpack.c.l.b16 %v209
    %v491 = vunpack.c.l.b16 %v210
    %v492 = vunpack.c.l.b16 %v211
    %v493 = vunpack.c.l.b16 %v212
    %v494 = vunpack.c.l.b16 %v213
    %v495 = vunpack.c.l.b16 %v214
    %v496 = vunpack.c.l.b16 %v215
    %v497 = vunpack.c.l.b16 %v216
    %v498 = vunpack.c.l.b16 %v217
    %v499 = vunpack.c.l.b16 %v218
    %v500 = vunpack.c.l.b16 %v219
    %v501 = vunpack.c.l.b16 %v220
    %v502 = vunpack.c.l.b16 %v221
    %v503 = vpack.c.b16 %v488, %v487
    %v504 = vpack.c.b16 %v490, %v489
    %v505 = vpack.c.b16 %v492, %v491
    %v506 = vpack.c.b16 %v494, %v493
    %v507 = vpack.c.b16 %v496, %v495
    %v508 = vpack.c.b16 %v498, %v497
    %v509 = vpack.c.b16 %v500, %v499
    %v510 = vpack.c.b16 %v502, %v501
    %519 = vmatprep.subr.bf16.mxu0 0
    %520 = vmatpush1.bf16.msra.mxu0 %v510
    %521 = vmatprep.subr.bf16.mxu0 0
    %522 = vmatpush1.bf16.msra.mxu0 %v509
    %523 = vmatprep.subr.bf16.mxu0 0
    %524 = vmatpush1.bf16.msra.mxu0 %v508
    %525 = vmatprep.subr.bf16.mxu0 0
    %526 = vmatpush1.bf16.msra.mxu0 %v507
    %527 = vmatprep.subr.bf16.mxu0 0
    %528 = vmatpush1.bf16.msra.mxu0 %v506
    %529 = vmatprep.subr.bf16.mxu0 0
    %530 = vmatpush1.bf16.msra.mxu0 %v505
    %531 = vmatprep.subr.bf16.mxu0 0
    %532 = vmatpush1.bf16.msra.mxu0 %v504
    %533 = vmatprep.subr.bf16.mxu0 0
    %534 = vmatpush1.bf16.msra.mxu0 %v503
    %535 = vmatprep.subr.bf16.mxu0 0
    %536 = vmatpush2.bf16.msra.mxu0 0
    %537 = vmatprep.subr.bf16.mxu0 0
    %538 = vmatpush2.bf16.msra.mxu0 0
    %539 = vmatprep.subr.bf16.mxu0 0
    %540 = vmatpush2.bf16.msra.mxu0 0
    %541 = vmatprep.subr.bf16.mxu0 0
    %542 = vmatpush2.bf16.msra.mxu0 0
    %543 = vmatprep.subr.bf16.mxu0 0
    %544 = vmatpush2.bf16.msra.mxu0 0
    %545 = vmatprep.subr.bf16.mxu0 0
    %546 = vmatpush2.bf16.msra.mxu0 0
    %547 = vmatprep.subr.bf16.mxu0 0
    %548 = vmatpush2.bf16.msra.mxu0 0
    %549 = vmatprep.subr.bf16.mxu0 0
    %550 = vmatpush2.bf16.msra.mxu0 0
    %551 = vmatprep.mubr.bf16.mxu0 0
    %552 = vmatmul.mubr.bf16.gmra.mxu0 %v463
    %v553 = vpop.f32.mrf.mxu0
    %v554 = vadd.f32 %v469, %v553
    %v555 = vpop.f32.mrf.mxu0
    %v556 = vpop.f32.mrf.mxu0
    %v557 = vpop.f32.mrf.mxu0
    %558 = vdwg.mxu0
    %559 = vst [vmem:[%s4] sm:$0xff] %v554
    // Predicated region
    $region22: #{qlearner_forward.1} parent=1 // pred_check
      _
    $region23: #{qlearner_forward.1} parent=1 // pred_check_branch
      %561 = sbr.rel (0) target = $region25
    $region24: #{qlearner_forward.1} parent=1 // pred_region
      _
    $region25: #{qlearner_forward.1} parent=1 // pred_fallthru
      _
    // Predicated region
    $region26: #{qlearner_forward.1} parent=1 // pred_check
      _
    $region27: #{qlearner_forward.1} parent=1 // pred_check_branch
      %563 = sbr.rel (0) target = $region29
    $region28: #{qlearner_forward.1} parent=1 // pred_region
      _
    $region29: #{qlearner_forward.1} parent=1 // pred_fallthru
      _
    %564 = vsyncpa [#allocation3], 1

</llo_original>
